<compile_context>
chip_gen: v7x
topology: tpu7x:2x2x1
jax: 0.10.0
libtpu: 0.0.40
codegen_flags: <defaults>
</compile_context>

<pallas_src>
import jax
import jax.numpy as jnp
from jax.experimental import pallas as pl
from jax.experimental.pallas import tpu as pltpu

LN_EPS = 1e-5  # torch.nn.LayerNorm default


def _round_up(x, m):
    return ((x + m - 1) // m) * m


# ---------------------------------------------------------------------------
# Parameter construction (plain JAX glue, mirrors the PyTorch __init__:
# orthogonal weights with tanh gain, 0.01x gain on the last layer). Biases are
# small random values so the bias-add path is exercised (set_flat_param allows
# arbitrary biases).
# ---------------------------------------------------------------------------
def make_params(key, input_dim, hidden_size, output_dim):
    ks = jax.random.split(key, 6)
    gain = 5.0 / 3.0                      # nn.init.calculate_gain('tanh')
    ortho = jax.nn.initializers.orthogonal()
    w1 = gain * ortho(ks[0], (hidden_size, input_dim), jnp.float32)             # (H, I)
    w2 = gain * ortho(ks[1], (hidden_size, hidden_size), jnp.float32)           # (H, H)
    w3 = (gain * 0.01) * ortho(ks[2], (output_dim, hidden_size), jnp.float32)   # (O, H)
    b1 = 0.1 * jax.random.normal(ks[3], (hidden_size,), jnp.float32)
    b2 = 0.1 * jax.random.normal(ks[4], (hidden_size,), jnp.float32)
    b3 = 0.1 * jax.random.normal(ks[5], (output_dim,), jnp.float32)
    return dict(w1=w1, b1=b1, w2=w2, b2=b2, w3=w3, b3=b3)


# ---------------------------------------------------------------------------
# Kernel body (shared by the grid-less and batch-tiled variants).
# ---------------------------------------------------------------------------
def _ln_feature_major(h, inv_n):
    # h: (features, batch); LayerNorm over features (axis 0), biased variance.
    # var = E[h^2] - mu^2: both cross-sublane reductions issue back-to-back,
    # one fewer full-size (H, chunk) subtract pass than mean((h - mu)^2).
    mu = jnp.sum(h, axis=0, keepdims=True) * inv_n
    ex2 = jnp.sum(h * h, axis=0, keepdims=True) * inv_n
    var = jnp.maximum(ex2 - mu * mu, 0.0)     # f32 cancellation guard
    return (h - mu) * jax.lax.rsqrt(var + LN_EPS)


def make_actor_kernel(max_action, hidden, chunk):
    inv_h = 1.0 / float(hidden)

    def actor_kernel(x_ref, w1_ref, b1_ref, w2_ref, b2_ref, w3_ref, b3_ref,
                     o_ref):
        bb = x_ref.shape[1]          # batch columns in this block (static)

        # Weights/biases loaded once per grid step (they are VMEM-resident).
        w1 = w1_ref[...]             # (H, I)
        w2 = w2_ref[...]             # (H, H)
        w3 = w3_ref[...]             # (O, H)
        b1 = b1_ref[...]             # (H, 1) broadcast over batch lanes
        b2 = b2_ref[...]             # (H, 1)
        b3 = b3_ref[...]             # (O, 1)

        # Static 128-lane column chunks so each chain's intermediates stay in
        # vregs; fall back to a single chunk when bb is not a chunk multiple.
        c = chunk if (bb % chunk == 0) else bb
        for s in range(0, bb, c):
            x = x_ref[:, s:s + c]                                          # (I, c)
            h1 = jnp.dot(w1, x, preferred_element_type=jnp.float32) + b1   # (H, c)
            a1 = jnp.tanh(_ln_feature_major(h1, inv_h))
            h2 = jnp.dot(w2, a1, preferred_element_type=jnp.float32) + b2  # (H, c)
            a2 = jnp.tanh(_ln_feature_major(h2, inv_h))
            h3 = jnp.dot(w3, a2, preferred_element_type=jnp.float32) + b3  # (O, c)
            o_ref[:, s:s + c] = (max_action * jnp.tanh(h3)).astype(o_ref.dtype)

    return actor_kernel


# ---------------------------------------------------------------------------
# Wrapper
# ---------------------------------------------------------------------------
def masked_actor_forward(x, params, max_action=1.0, *,
                         batch_tile=1024, chunk=128):
    batch, input_dim = x.shape
    hidden = params["w1"].shape[0]
    output_dim = params["w3"].shape[0]

    # Feature-major: transpose activations once; weights stay PyTorch (out,in).
    xT = x.T.astype(jnp.float32)                                  # (I, B)
    w1 = params["w1"].astype(jnp.float32)                         # (H, I)
    w2 = params["w2"].astype(jnp.float32)                         # (H, H)
    w3 = params["w3"].astype(jnp.float32)                         # (O, H)
    b1 = params["b1"].reshape(hidden, 1).astype(jnp.float32)
    b2 = params["b2"].reshape(hidden, 1).astype(jnp.float32)
    b3 = params["b3"].reshape(output_dim, 1).astype(jnp.float32)

    kernel = make_actor_kernel(float(max_action), hidden, chunk)

    def cost(n_cols):
        flops = 2 * n_cols * (input_dim * hidden + hidden * hidden
                              + hidden * output_dim)
        trans = n_cols * (2 * hidden + output_dim + 2)            # tanh + rsqrt
        # Only HBM-visible arrays: input, compact output, weights, biases.
        bytes_accessed = 4 * (n_cols * (input_dim + output_dim)
                              + input_dim * hidden + hidden * hidden
                              + hidden * output_dim + 2 * hidden + output_dim)
        return pl.CostEstimate(flops=int(flops), transcendentals=int(trans),
                               bytes_accessed=int(bytes_accessed))

    if batch <= batch_tile:
        # Small problem: single grid-less invocation, everything VMEM-resident.
        vmem = pl.BlockSpec(memory_space=pltpu.MemorySpace.VMEM)
        out = pl.pallas_call(
            kernel,
            out_shape=jax.ShapeDtypeStruct((output_dim, batch), jnp.float32),
            in_specs=[vmem] * 7,
            out_specs=vmem,
            cost_estimate=cost(batch),
        )(xT, w1, b1, w2, b2, w3, b3)
        return out.T

    # Large batch: tile the batch (lane) axis; "parallel" shards across the
    # two TensorCores on v7x. Weights/biases get constant index_maps so they
    # stay resident in VMEM instead of being re-DMA'd per tile.
    batch_tile = _round_up(batch_tile, max(chunk, 128))
    padded_batch = _round_up(batch, batch_tile)
    xTp = jnp.pad(xT, ((0, 0), (0, padded_batch - batch)))        # cheap: 16 rows
    n_tiles = padded_batch // batch_tile

    def resident(shape):
        return pl.BlockSpec(shape, lambda i: (0,) * len(shape))

    out = pl.pallas_call(
        kernel,
        out_shape=jax.ShapeDtypeStruct((output_dim, padded_batch), jnp.float32),
        grid=(n_tiles,),
        in_specs=[
            pl.BlockSpec((input_dim, batch_tile), lambda i: (0, i)),
            resident((hidden, input_dim)),
            resident((hidden, 1)),
            resident((hidden, hidden)),
            resident((hidden, 1)),
            resident((output_dim, hidden)),
            resident((output_dim, 1)),
        ],
        out_specs=pl.BlockSpec((output_dim, batch_tile), lambda i: (0, i)),
        compiler_params=pltpu.CompilerParams(
            dimension_semantics=("parallel",)),
        cost_estimate=cost(padded_batch),
    )(xTp, w1, b1, w2, b2, w3, b3)
    # Output is a compact (O, padded_B) slab; the trailing-column trim and
    # transpose back to (B, O) are tiny (O = 4 rows).
    return out[:, :batch].T


# Plain-JAX reference (standard torch LayerNorm form) for validation.
def reference_forward(x, params, max_action=1.0):
    def ln(h):
        mu = jnp.mean(h, axis=-1, keepdims=True)
        var = jnp.mean((h - mu) * (h - mu), axis=-1, keepdims=True)
        return (h - mu) * jax.lax.rsqrt(var + LN_EPS)
    h1 = x @ params["w1"].T + params["b1"]
    a1 = jnp.tanh(ln(h1))
    h2 = a1 @ params["w2"].T + params["b2"]
    a2 = jnp.tanh(ln(h2))
    h3 = a2 @ params["w3"].T + params["b3"]
    return max_action * jnp.tanh(h3)


if __name__ == "__main__":
    input_dim, hidden_size, output_dim = 16, 64, 4
    max_action = 1.0

    key = jax.random.PRNGKey(0)
    k1, k2, k3, kp = jax.random.split(key, 4)
    params = make_params(kp, input_dim, hidden_size, output_dim)

    # 1) Tiny batch -> grid-less, fully VMEM-resident path (single chunk).
    x_small = jax.random.normal(k1, (8, input_dim), jnp.float32)
    out_small = jax.block_until_ready(
        masked_actor_forward(x_small, params, max_action))
    ref_small = reference_forward(x_small, params, max_action)
    assert out_small.shape == (8, output_dim)
    assert jnp.allclose(out_small, ref_small, atol=1e-4, rtol=1e-4), \
        "small-batch mismatch vs reference"

    # 2) Grid path (batch not a tile multiple): 4 "parallel" tiles of 256
    #    columns, each processed in two 128-lane chunks, resident weights.
    x_grid = jax.random.normal(k2, (1000, input_dim), jnp.float32)
    out_grid = jax.block_until_ready(
        masked_actor_forward(x_grid, params, max_action,
                             batch_tile=256, chunk=128))
    ref_grid = reference_forward(x_grid, params, max_action)
    assert out_grid.shape == (1000, output_dim)
    assert jnp.allclose(out_grid, ref_grid, atol=1e-4, rtol=1e-4), \
        "grid-path mismatch vs reference"

    # 3) Grid-less path exercising the in-kernel chunk loop (512 = 4 x 128).
    x_mid = jax.random.normal(k3, (512, input_dim), jnp.float32)
    out_mid = jax.block_until_ready(
        masked_actor_forward(x_mid, params, max_action))
    ref_mid = reference_forward(x_mid, params, max_action)
    assert out_mid.shape == (512, output_dim)
    assert jnp.allclose(out_mid, ref_mid, atol=1e-4, rtol=1e-4), \
        "chunked grid-less mismatch vs reference"

    print("KERNEL_OK")
</pallas_src>

<mosaic_0001>
module attributes {stable_mosaic.version = 11 : i64} {
  func.func @actor_kernel(%arg0: memref<16x8xf32, #tpu.memory_space<vmem>>, %arg1: memref<64x16xf32, #tpu.memory_space<vmem>>, %arg2: memref<64x1xf32, #tpu.memory_space<vmem>>, %arg3: memref<64x64xf32, #tpu.memory_space<vmem>>, %arg4: memref<64x1xf32, #tpu.memory_space<vmem>>, %arg5: memref<4x64xf32, #tpu.memory_space<vmem>>, %arg6: memref<4x1xf32, #tpu.memory_space<vmem>>, %arg7: memref<4x8xf32, #tpu.memory_space<vmem>>) attributes {dimension_semantics = [], scalar_prefetch = 0 : i64, scratch_operands = 0 : i64, tpu.core_type = #tpu.core_type<tc>} {
    %c0 = arith.constant 0 : index
    %c0_0 = arith.constant 0 : index
    %0 = vector.load %arg1[%c0, %c0_0] : memref<64x16xf32, #tpu.memory_space<vmem>>, vector<64x16xf32>
    %c0_1 = arith.constant 0 : index
    %c0_2 = arith.constant 0 : index
    %1 = vector.load %arg3[%c0_1, %c0_2] : memref<64x64xf32, #tpu.memory_space<vmem>>, vector<64x64xf32>
    %c0_3 = arith.constant 0 : index
    %c0_4 = arith.constant 0 : index
    %2 = vector.load %arg5[%c0_3, %c0_4] : memref<4x64xf32, #tpu.memory_space<vmem>>, vector<4x64xf32>
    %c0_5 = arith.constant 0 : index
    %c0_6 = arith.constant 0 : index
    %3 = vector.load %arg2[%c0_5, %c0_6] : memref<64x1xf32, #tpu.memory_space<vmem>>, vector<64x1xf32>
    %c0_7 = arith.constant 0 : index
    %c0_8 = arith.constant 0 : index
    %4 = vector.load %arg4[%c0_7, %c0_8] : memref<64x1xf32, #tpu.memory_space<vmem>>, vector<64x1xf32>
    %c0_9 = arith.constant 0 : index
    %c0_10 = arith.constant 0 : index
    %5 = vector.load %arg6[%c0_9, %c0_10] : memref<4x1xf32, #tpu.memory_space<vmem>>, vector<4x1xf32>
    %c0_11 = arith.constant 0 : index
    %c0_12 = arith.constant 0 : index
    %6 = vector.load %arg0[%c0_11, %c0_12] : memref<16x8xf32, #tpu.memory_space<vmem>>, vector<16x8xf32>
    %cst = arith.constant dense<0.000000e+00> : vector<64x8xf32>
    %7 = tpu.matmul %0, %6, %cst {dimension_numbers = #tpu.dot_dimension_numbers<[1], [0], [0], [1], [0, 0, 1, 1], [], []>} : vector<64x16xf32>, vector<16x8xf32>, vector<64x8xf32> -> vector<64x8xf32>
    %8 = vector.broadcast %3 : vector<64x1xf32> to vector<64x8xf32>
    %9 = arith.addf %7, %8 : vector<64x8xf32>
    %cst_13 = arith.constant dense<0.000000e+00> : vector<8xf32>
    %10 = vector.multi_reduction <add>, %9, %cst_13 [0] : vector<64x8xf32> to vector<8xf32>
    %11 = vector.shape_cast %10 : vector<8xf32> to vector<1x8xf32>
    %cst_14 = arith.constant 1.562500e-02 : f32
    %12 = vector.broadcast %cst_14 : f32 to vector<1x8xf32>
    %13 = arith.mulf %11, %12 : vector<1x8xf32>
    %14 = arith.mulf %9, %9 : vector<64x8xf32>
    %cst_15 = arith.constant dense<0.000000e+00> : vector<8xf32>
    %15 = vector.multi_reduction <add>, %14, %cst_15 [0] : vector<64x8xf32> to vector<8xf32>
    %16 = vector.shape_cast %15 : vector<8xf32> to vector<1x8xf32>
    %cst_16 = arith.constant 1.562500e-02 : f32
    %17 = vector.broadcast %cst_16 : f32 to vector<1x8xf32>
    %18 = arith.mulf %16, %17 : vector<1x8xf32>
    %19 = arith.mulf %13, %13 : vector<1x8xf32>
    %20 = arith.subf %18, %19 : vector<1x8xf32>
    %cst_17 = arith.constant 0.000000e+00 : f32
    %21 = vector.broadcast %cst_17 : f32 to vector<1x8xf32>
    %22 = arith.maximumf %20, %21 : vector<1x8xf32>
    %23 = vector.broadcast %13 : vector<1x8xf32> to vector<64x8xf32>
    %24 = arith.subf %9, %23 : vector<64x8xf32>
    %cst_18 = arith.constant 9.99999974E-6 : f32
    %25 = vector.broadcast %cst_18 : f32 to vector<1x8xf32>
    %26 = arith.addf %22, %25 : vector<1x8xf32>
    %27 = math.rsqrt %26 : vector<1x8xf32>
    %28 = vector.broadcast %27 : vector<1x8xf32> to vector<64x8xf32>
    %29 = arith.mulf %24, %28 : vector<64x8xf32>
    %30 = math.tanh %29 : vector<64x8xf32>
    %cst_19 = arith.constant dense<0.000000e+00> : vector<64x8xf32>
    %31 = tpu.matmul %1, %30, %cst_19 {dimension_numbers = #tpu.dot_dimension_numbers<[1], [0], [0], [1], [0, 0, 1, 1], [], []>} : vector<64x64xf32>, vector<64x8xf32>, vector<64x8xf32> -> vector<64x8xf32>
    %32 = vector.broadcast %4 : vector<64x1xf32> to vector<64x8xf32>
    %33 = arith.addf %31, %32 : vector<64x8xf32>
    %cst_20 = arith.constant dense<0.000000e+00> : vector<8xf32>
    %34 = vector.multi_reduction <add>, %33, %cst_20 [0] : vector<64x8xf32> to vector<8xf32>
    %35 = vector.shape_cast %34 : vector<8xf32> to vector<1x8xf32>
    %cst_21 = arith.constant 1.562500e-02 : f32
    %36 = vector.broadcast %cst_21 : f32 to vector<1x8xf32>
    %37 = arith.mulf %35, %36 : vector<1x8xf32>
    %38 = arith.mulf %33, %33 : vector<64x8xf32>
    %cst_22 = arith.constant dense<0.000000e+00> : vector<8xf32>
    %39 = vector.multi_reduction <add>, %38, %cst_22 [0] : vector<64x8xf32> to vector<8xf32>
    %40 = vector.shape_cast %39 : vector<8xf32> to vector<1x8xf32>
    %cst_23 = arith.constant 1.562500e-02 : f32
    %41 = vector.broadcast %cst_23 : f32 to vector<1x8xf32>
    %42 = arith.mulf %40, %41 : vector<1x8xf32>
    %43 = arith.mulf %37, %37 : vector<1x8xf32>
    %44 = arith.subf %42, %43 : vector<1x8xf32>
    %cst_24 = arith.constant 0.000000e+00 : f32
    %45 = vector.broadcast %cst_24 : f32 to vector<1x8xf32>
    %46 = arith.maximumf %44, %45 : vector<1x8xf32>
    %47 = vector.broadcast %37 : vector<1x8xf32> to vector<64x8xf32>
    %48 = arith.subf %33, %47 : vector<64x8xf32>
    %cst_25 = arith.constant 9.99999974E-6 : f32
    %49 = vector.broadcast %cst_25 : f32 to vector<1x8xf32>
    %50 = arith.addf %46, %49 : vector<1x8xf32>
    %51 = math.rsqrt %50 : vector<1x8xf32>
    %52 = vector.broadcast %51 : vector<1x8xf32> to vector<64x8xf32>
    %53 = arith.mulf %48, %52 : vector<64x8xf32>
    %54 = math.tanh %53 : vector<64x8xf32>
    %cst_26 = arith.constant dense<0.000000e+00> : vector<4x8xf32>
    %55 = tpu.matmul %2, %54, %cst_26 {dimension_numbers = #tpu.dot_dimension_numbers<[1], [0], [0], [1], [0, 0, 1, 1], [], []>} : vector<4x64xf32>, vector<64x8xf32>, vector<4x8xf32> -> vector<4x8xf32>
    %56 = vector.broadcast %5 : vector<4x1xf32> to vector<4x8xf32>
    %57 = arith.addf %55, %56 : vector<4x8xf32>
    %58 = math.tanh %57 : vector<4x8xf32>
    %cst_27 = arith.constant 1.000000e+00 : f32
    %59 = vector.broadcast %cst_27 : f32 to vector<4x8xf32>
    %60 = arith.mulf %59, %58 : vector<4x8xf32>
    %c0_28 = arith.constant 0 : index
    %c0_29 = arith.constant 0 : index
    %61 = vector.load %arg7[%c0_28, %c0_29] : memref<4x8xf32, #tpu.memory_space<vmem>>, vector<4x8xf32>
    tpu.vector_store %arg7[%c0_28, %c0_29], %60 {strides = array<i32>} : memref<4x8xf32, #tpu.memory_space<vmem>>, vector<4x8xf32>,
    return
  }
}

</mosaic_0001>

<llo_original>
// kernel: tpu_custom_call.1
$region0: #{tpu_custom_call.1}
  #allocation0 [shape = 'u32[]', space=smem, size = 0x4, offset = 0x4, fixed_abs, tag = 'smem constant byte address 0x4 - core index']
  #allocation1 [shape = 'u32[144,128]{1,0:T(1,128)}', space=vmem, size = 0x12000, scoped, tag = 'internal scratch']
  %s0 = inlined_call_operand.vmem [shape: f32[16,8], index: 0, kind: input, shape index: {}]
  %s1 = inlined_call_operand.vmem [shape: f32[64,16], index: 1, kind: input, shape index: {}]
  %s2 = inlined_call_operand.vmem [shape: f32[64,1], index: 2, kind: input, shape index: {}]
  %s3 = inlined_call_operand.vmem [shape: f32[64,64], index: 3, kind: input, shape index: {}]
  %s4 = inlined_call_operand.vmem [shape: f32[64,1], index: 4, kind: input, shape index: {}]
  %s5 = inlined_call_operand.vmem [shape: f32[4,64], index: 5, kind: input, shape index: {}]
  %s6 = inlined_call_operand.vmem [shape: f32[4,1], index: 6, kind: input, shape index: {}]
  %s7 = inlined_call_operand.hbm [shape: f32[4,8], index: 7, kind: output, shape index: {}]
  %s8 = sld [smem:[#allocation0]]
  $region38: #{tpu_custom_call.1} parent=0
    _
  %s10 = ssub.s32 1, %s8
  %s11 = scalar_select 0, %s10, %s8
  $region1: #{tpu_custom_call.1} parent=0
    #allocation2 [shape = 'u8[2048]{0}', space=vmem, size = 0x800, scoped, tag = 'output window, operand 0, single buffered']
    #allocation3 [shape = 's32[1]{0}', space=sflag, size = 0x4, scoped, tag = 'scoped memory for tpu_custom_call.1']
    %12 = vsyncpa [#allocation3], 0
    // Predicated region
    $region2: #{tpu_custom_call.1} parent=1 // pred_check
      _
    $region3: #{tpu_custom_call.1} parent=1 // pred_check_branch
      %14 = sbr.rel (0) target = $region5
    $region4: #{tpu_custom_call.1} parent=1 // pred_region
      _
    $region5: #{tpu_custom_call.1} parent=1 // pred_fallthru
      _
    // Predicated region
    $region6: #{tpu_custom_call.1} parent=1 // pred_check
      _
    $region7: #{tpu_custom_call.1} parent=1 // pred_check_branch
      %16 = sbr.rel (0) target = $region9
    $region8: #{tpu_custom_call.1} parent=1 // pred_region
      _
    $region9: #{tpu_custom_call.1} parent=1 // pred_fallthru
      _
    // Predicated region
    $region10: #{tpu_custom_call.1} parent=1 // pred_check
      _
    $region11: #{tpu_custom_call.1} parent=1 // pred_check_branch
      %18 = sbr.rel (0) target = $region13
    $region12: #{tpu_custom_call.1} parent=1 // pred_region
      _
    $region13: #{tpu_custom_call.1} parent=1 // pred_fallthru
      _
    // Predicated region
    $region14: #{tpu_custom_call.1} parent=1 // pred_check
      _
    $region15: #{tpu_custom_call.1} parent=1 // pred_check_branch
      %20 = sbr.rel (0) target = $region17
    $region16: #{tpu_custom_call.1} parent=1 // pred_region
      _
    $region17: #{tpu_custom_call.1} parent=1 // pred_fallthru
      _
    // Predicated region
    $region18: #{tpu_custom_call.1} parent=1 // pred_check
      _
    $region19: #{tpu_custom_call.1} parent=1 // pred_check_branch
      %22 = sbr.rel (0) target = $region21
    $region20: #{tpu_custom_call.1} parent=1 // pred_region
      _
    $region21: #{tpu_custom_call.1} parent=1 // pred_fallthru
      _
    // Predicated region
    $region22: #{tpu_custom_call.1} parent=1 // pred_check
      _
    $region23: #{tpu_custom_call.1} parent=1 // pred_check_branch
      %24 = sbr.rel (0) target = $region25
    $region24: #{tpu_custom_call.1} parent=1 // pred_region
      _
    $region25: #{tpu_custom_call.1} parent=1 // pred_fallthru
      _
    // Predicated region
    $region26: #{tpu_custom_call.1} parent=1 // pred_check
      _
    $region27: #{tpu_custom_call.1} parent=1 // pred_check_branch
      %26 = sbr.rel (0) target = $region29
    $region28: #{tpu_custom_call.1} parent=1 // pred_region
      _
    $region29: #{tpu_custom_call.1} parent=1 // pred_fallthru
      _
    %v27 = vld [vmem:[%s1] sm:$0xff]
    %v28 = vld [vmem:[%s1 + $0x8] sm:$0xff]
    %v29 = vld [vmem:[%s1 + $0x10] sm:$0xff]
    %v30 = vld [vmem:[%s1 + $0x18] sm:$0xff]
    %v31 = vld [vmem:[%s1 + $0x20] sm:$0xff]
    %v32 = vld [vmem:[%s1 + $0x28] sm:$0xff]
    %v33 = vld [vmem:[%s1 + $0x30] sm:$0xff]
    %v34 = vld [vmem:[%s1 + $0x38] sm:$0xff]
    %v35 = vld [vmem:[%s3] sm:$0xff]
    %v36 = vld [vmem:[%s3 + $0x8] sm:$0xff]
    %v37 = vld [vmem:[%s3 + $0x10] sm:$0xff]
    %v38 = vld [vmem:[%s3 + $0x18] sm:$0xff]
    %v39 = vld [vmem:[%s3 + $0x20] sm:$0xff]
    %v40 = vld [vmem:[%s3 + $0x28] sm:$0xff]
    %v41 = vld [vmem:[%s3 + $0x30] sm:$0xff]
    %v42 = vld [vmem:[%s3 + $0x38] sm:$0xff]
    %v43 = vld [vmem:[%s5] sm:$0xf]
    %v44 = vld [vmem:[%s2] sm:$0xff]
    %v45 = vld [vmem:[%s2 + $0x8] sm:$0xff]
    %v46 = vld [vmem:[%s2 + $0x10] sm:$0xff]
    %v47 = vld [vmem:[%s2 + $0x18] sm:$0xff]
    %v48 = vld [vmem:[%s2 + $0x20] sm:$0xff]
    %v49 = vld [vmem:[%s2 + $0x28] sm:$0xff]
    %v50 = vld [vmem:[%s2 + $0x30] sm:$0xff]
    %v51 = vld [vmem:[%s2 + $0x38] sm:$0xff]
    %v52 = vld [vmem:[%s4] sm:$0xff]
    %v53 = vld [vmem:[%s4 + $0x8] sm:$0xff]
    %v54 = vld [vmem:[%s4 + $0x10] sm:$0xff]
    %v55 = vld [vmem:[%s4 + $0x18] sm:$0xff]
    %v56 = vld [vmem:[%s4 + $0x20] sm:$0xff]
    %v57 = vld [vmem:[%s4 + $0x28] sm:$0xff]
    %v58 = vld [vmem:[%s4 + $0x30] sm:$0xff]
    %v59 = vld [vmem:[%s4 + $0x38] sm:$0xff]
    %v60 = vld [vmem:[%s6] sm:$0xf]
    %v61 = vld [vmem:[%s0] sm:$0xff]
    %v62 = vld [vmem:[%s0 + $0x8] sm:$0xff]
    %64 = vset.pattern.permute.xlu0 0
    %65 = vperm.xlu0 %64, %v44
    %v66 = vpop.permute.xlu0 %65
    %69 = vset.pattern.permute.xlu0 0
    %70 = vperm.xlu0 %69, %v45
    %v71 = vpop.permute.xlu0 %70
    %74 = vset.pattern.permute.xlu0 0
    %75 = vperm.xlu0 %74, %v46
    %v76 = vpop.permute.xlu0 %75
    %79 = vset.pattern.permute.xlu0 0
    %80 = vperm.xlu0 %79, %v47
    %v81 = vpop.permute.xlu0 %80
    %84 = vset.pattern.permute.xlu0 0
    %85 = vperm.xlu0 %84, %v48
    %v86 = vpop.permute.xlu0 %85
    %89 = vset.pattern.permute.xlu0 0
    %90 = vperm.xlu0 %89, %v49
    %v91 = vpop.permute.xlu0 %90
    %94 = vset.pattern.permute.xlu0 0
    %95 = vperm.xlu0 %94, %v50
    %v96 = vpop.permute.xlu0 %95
    %99 = vset.pattern.permute.xlu0 0
    %100 = vperm.xlu0 %99, %v51
    %v101 = vpop.permute.xlu0 %100
    %vm103 = vcmask 130048
    %v105 = vsel %vm103, %v27, 0
    %v108 = vsel %vm103, %v28, 0
    %v111 = vsel %vm103, %v29, 0
    %v114 = vsel %vm103, %v30, 0
    %v117 = vsel %vm103, %v31, 0
    %v120 = vsel %vm103, %v32, 0
    %v123 = vsel %vm103, %v33, 0
    %v126 = vsel %vm103, %v34, 0
    %128 = vmatprep.subr.mxu0 0.0
    %129 = vmatpush1.msra.mxu0 %v61
    %130 = vmatprep.subr.mxu0 0.0
    %131 = vmatpush1.msra.mxu0 %v62
    %132 = vmatprep.subr.mxu0 0.0
    %133 = vmatpush1.msra.mxu0 0.0
    %134 = vmatprep.subr.mxu0 0.0
    %135 = vmatpush1.msra.mxu0 0.0
    %136 = vmatprep.subr.mxu0 0.0
    %137 = vmatpush1.msra.mxu0 0.0
    %138 = vmatprep.subr.mxu0 0.0
    %139 = vmatpush1.msra.mxu0 0.0
    %140 = vmatprep.subr.mxu0 0.0
    %141 = vmatpush1.msra.mxu0 0.0
    %142 = vmatprep.subr.mxu0 0.0
    %143 = vmatpush1.msra.mxu0 0.0
    %144 = vmatprep.subr.mxu0 0.0
    %145 = vmatpush1.msra.mxu0 0.0
    %146 = vmatprep.subr.mxu0 0.0
    %147 = vmatpush1.msra.mxu0 0.0
    %148 = vmatprep.subr.mxu0 0.0
    %149 = vmatpush1.msra.mxu0 0.0
    %150 = vmatprep.subr.mxu0 0.0
    %151 = vmatpush1.msra.mxu0 0.0
    %152 = vmatprep.subr.mxu0 0.0
    %153 = vmatpush1.msra.mxu0 0.0
    %154 = vmatprep.subr.mxu0 0.0
    %155 = vmatpush1.msra.mxu0 0.0
    %156 = vmatprep.subr.mxu0 0.0
    %157 = vmatpush1.msra.mxu0 0.0
    %158 = vmatprep.subr.mxu0 0.0
    %159 = vmatpush1.msra.mxu0 0.0
    %160 = vmatprep.subr.mxu0 0.0
    %161 = vmatpush1.msra.mxu0 0.0
    %162 = vmatprep.subr.mxu0 0.0
    %163 = vmatpush1.msra.mxu0 0.0
    %164 = vmatprep.subr.mxu0 0.0
    %165 = vmatpush1.msra.mxu0 0.0
    %166 = vmatprep.subr.mxu0 0.0
    %167 = vmatpush1.msra.mxu0 0.0
    %168 = vmatprep.subr.mxu0 0.0
    %169 = vmatpush1.msra.mxu0 0.0
    %170 = vmatprep.subr.mxu0 0.0
    %171 = vmatpush1.msra.mxu0 0.0
    %172 = vmatprep.subr.mxu0 0.0
    %173 = vmatpush1.msra.mxu0 0.0
    %174 = vmatprep.subr.mxu0 0.0
    %175 = vmatpush1.msra.mxu0 0.0
    %176 = vmatprep.subr.mxu0 0.0
    %177 = vmatpush1.msra.mxu0 0.0
    %178 = vmatprep.subr.mxu0 0.0
    %179 = vmatpush1.msra.mxu0 0.0
    %180 = vmatprep.subr.mxu0 0.0
    %181 = vmatpush1.msra.mxu0 0.0
    %182 = vmatprep.subr.mxu0 0.0
    %183 = vmatpush1.msra.mxu0 0.0
    %184 = vmatprep.subr.mxu0 0.0
    %185 = vmatpush1.msra.mxu0 0.0
    %186 = vmatprep.subr.mxu0 0.0
    %187 = vmatpush1.msra.mxu0 0.0
    %188 = vmatprep.subr.mxu0 0.0
    %189 = vmatpush1.msra.mxu0 0.0
    %190 = vmatprep.subr.mxu0 0.0
    %191 = vmatpush1.msra.mxu0 0.0
    %192 = vmatprep.mubr.f32.mxu0 0.0
    %193 = vmatmul.mubr.f32.gmra.mrb[0].mxu0 %v105
    %v194 = vpop.f32.mrb[0].mxu0
    %v195 = vadd.f32 %v66, %v194
    %v196 = vpop.f32.mrb[0].mxu0
    %197 = vmatprep.mubr.f32.mxu0 0.0
    %198 = vmatmul.mubr.f32.gmra.mrb[0].mxu0 %v108
    %v199 = vpop.f32.mrb[0].mxu0
    %v200 = vadd.f32 %v71, %v199
    %v201 = vpop.f32.mrb[0].mxu0
    %202 = vmatprep.mubr.f32.mxu0 0.0
    %203 = vmatmul.mubr.f32.gmra.mrb[0].mxu0 %v111
    %v204 = vpop.f32.mrb[0].mxu0
    %v205 = vadd.f32 %v76, %v204
    %v206 = vpop.f32.mrb[0].mxu0
    %207 = vmatprep.mubr.f32.mxu0 0.0
    %208 = vmatmul.mubr.f32.gmra.mrb[0].mxu0 %v114
    %v209 = vpop.f32.mrb[0].mxu0
    %v210 = vadd.f32 %v81, %v209
    %v211 = vpop.f32.mrb[0].mxu0
    %212 = vmatprep.mubr.f32.mxu0 0.0
    %213 = vmatmul.mubr.f32.gmra.mrb[0].mxu0 %v117
    %v214 = vpop.f32.mrb[0].mxu0
    %v215 = vadd.f32 %v86, %v214
    %v216 = vpop.f32.mrb[0].mxu0
    %217 = vmatprep.mubr.f32.mxu0 0.0
    %218 = vmatmul.mubr.f32.gmra.mrb[0].mxu0 %v120
    %v219 = vpop.f32.mrb[0].mxu0
    %v220 = vadd.f32 %v91, %v219
    %v221 = vpop.f32.mrb[0].mxu0
    %222 = vmatprep.mubr.f32.mxu0 0.0
    %223 = vmatmul.mubr.f32.gmra.mrb[0].mxu0 %v123
    %v224 = vpop.f32.mrb[0].mxu0
    %v225 = vadd.f32 %v96, %v224
    %v226 = vpop.f32.mrb[0].mxu0
    %227 = vmatprep.mubr.f32.mxu0 0.0
    %228 = vmatmul.mubr.f32.gmra.mrb[0].mxu0 %v126
    %v229 = vpop.f32.mrb[0].mxu0
    %v230 = vadd.f32 %v101, %v229
    %v231 = vpop.f32.mrb[0].mxu0
    %232 = vdwg.mxu0
    %vm233 = vcmask 64512
    %v234 = vsel %vm233, %v195, 0.0
    %v235 = vsel %vm233, %v200, 0.0
    %v236 = vadd.f32 %v234, %v235
    %v237 = vsel %vm233, %v205, 0.0
    %v238 = vadd.f32 %v236, %v237
    %v239 = vsel %vm233, %v210, 0.0
    %v240 = vadd.f32 %v238, %v239
    %v241 = vsel %vm233, %v215, 0.0
    %v242 = vadd.f32 %v240, %v241
    %v243 = vsel %vm233, %v220, 0.0
    %v244 = vadd.f32 %v242, %v243
    %v245 = vsel %vm233, %v225, 0.0
    %v246 = vadd.f32 %v244, %v245
    %v247 = vsel %vm233, %v230, 0.0
    %v248 = vadd.f32 %v246, %v247
    %v249 = vrot.slane %v248, 4
    %v250 = vadd.f32 %v248, %v249
    %v251 = vrot.slane %v250, 2
    %v252 = vadd.f32 %v250, %v251
    %v253 = vrot.slane %v252, 1
    %v254 = vadd.f32 %v252, %v253
    %v255 = vmul.f32 %v254, 0.015625
    %v256 = vmul.f32 %v195, %v195
    %v257 = vmul.f32 %v200, %v200
    %v258 = vmul.f32 %v205, %v205
    %v259 = vmul.f32 %v210, %v210
    %v260 = vmul.f32 %v215, %v215
    %v261 = vmul.f32 %v220, %v220
    %v262 = vmul.f32 %v225, %v225
    %v263 = vmul.f32 %v230, %v230
    %v264 = vsel %vm233, %v256, 0.0
    %v265 = vsel %vm233, %v257, 0.0
    %v266 = vadd.f32 %v264, %v265
    %v267 = vsel %vm233, %v258, 0.0
    %v268 = vadd.f32 %v266, %v267
    %v269 = vsel %vm233, %v259, 0.0
    %v270 = vadd.f32 %v268, %v269
    %v271 = vsel %vm233, %v260, 0.0
    %v272 = vadd.f32 %v270, %v271
    %v273 = vsel %vm233, %v261, 0.0
    %v274 = vadd.f32 %v272, %v273
    %v275 = vsel %vm233, %v262, 0.0
    %v276 = vadd.f32 %v274, %v275
    %v277 = vsel %vm233, %v263, 0.0
    %v278 = vadd.f32 %v276, %v277
    %v279 = vrot.slane %v278, 4
    %v280 = vadd.f32 %v278, %v279
    %v281 = vrot.slane %v280, 2
    %v282 = vadd.f32 %v280, %v281
    %v283 = vrot.slane %v282, 1
    %v284 = vadd.f32 %v282, %v283
    %v285 = vmul.f32 %v284, 0.015625
    %v286 = vmul.f32 %v255, %v255
    %v287 = vsub.f32 %v285, %v286
    %v288 = vmax.f32 %v287, 0.0
    %v289 = vsub.f32 %v195, %v255
    %v290 = vsub.f32 %v200, %v255
    %v291 = vsub.f32 %v205, %v255
    %v292 = vsub.f32 %v210, %v255
    %v293 = vsub.f32 %v215, %v255
    %v294 = vsub.f32 %v220, %v255
    %v295 = vsub.f32 %v225, %v255
    %v296 = vsub.f32 %v230, %v255
    %v297 = vadd.f32 %v288, 1e-05
    %v298 = vrsqrt.pop %v297
    %v299 = vmul.f32 %v289, %v298
    %v300 = vmul.f32 %v290, %v298
    %v301 = vmul.f32 %v291, %v298
    %v302 = vmul.f32 %v292, %v298
    %v303 = vmul.f32 %v293, %v298
    %v304 = vmul.f32 %v294, %v298
    %v305 = vmul.f32 %v295, %v298
    %v306 = vmul.f32 %v296, %v298
    %v307 = vtanh.pop %v299
    %v308 = vtanh.pop %v300
    %v309 = vtanh.pop %v301
    %v310 = vtanh.pop %v302
    %v311 = vtanh.pop %v303
    %v312 = vtanh.pop %v304
    %v313 = vtanh.pop %v305
    %v314 = vtanh.pop %v306
    %316 = vset.pattern.permute.xlu0 0
    %317 = vperm.xlu0 %316, %v52
    %v318 = vpop.permute.xlu0 %317
    %321 = vset.pattern.permute.xlu0 0
    %322 = vperm.xlu0 %321, %v53
    %v323 = vpop.permute.xlu0 %322
    %326 = vset.pattern.permute.xlu0 0
    %327 = vperm.xlu0 %326, %v54
    %v328 = vpop.permute.xlu0 %327
    %331 = vset.pattern.permute.xlu0 0
    %332 = vperm.xlu0 %331, %v55
    %v333 = vpop.permute.xlu0 %332
    %336 = vset.pattern.permute.xlu0 0
    %337 = vperm.xlu0 %336, %v56
    %v338 = vpop.permute.xlu0 %337
    %341 = vset.pattern.permute.xlu0 0
    %342 = vperm.xlu0 %341, %v57
    %v343 = vpop.permute.xlu0 %342
    %346 = vset.pattern.permute.xlu0 0
    %347 = vperm.xlu0 %346, %v58
    %v348 = vpop.permute.xlu0 %347
    %351 = vset.pattern.permute.xlu0 0
    %352 = vperm.xlu0 %351, %v59
    %v353 = vpop.permute.xlu0 %352
    %vm355 = vcmask 523264
    %v357 = vsel %vm355, %v35, 0
    %v360 = vsel %vm355, %v36, 0
    %v363 = vsel %vm355, %v37, 0
    %v366 = vsel %vm355, %v38, 0
    %v369 = vsel %vm355, %v39, 0
    %v372 = vsel %vm355, %v40, 0
    %v375 = vsel %vm355, %v41, 0
    %v378 = vsel %vm355, %v42, 0
    %380 = vmatprep.subr.mxu0 0.0
    %381 = vmatpush1.msra.mxu0 %v307
    %382 = vmatprep.subr.mxu0 0.0
    %383 = vmatpush1.msra.mxu0 %v308
    %384 = vmatprep.subr.mxu0 0.0
    %385 = vmatpush1.msra.mxu0 %v309
    %386 = vmatprep.subr.mxu0 0.0
    %387 = vmatpush1.msra.mxu0 %v310
    %388 = vmatprep.subr.mxu0 0.0
    %389 = vmatpush1.msra.mxu0 %v311
    %390 = vmatprep.subr.mxu0 0.0
    %391 = vmatpush1.msra.mxu0 %v312
    %392 = vmatprep.subr.mxu0 0.0
    %393 = vmatpush1.msra.mxu0 %v313
    %394 = vmatprep.subr.mxu0 0.0
    %395 = vmatpush1.msra.mxu0 %v314
    %396 = vmatprep.subr.mxu0 0.0
    %397 = vmatpush1.msra.mxu0 0.0
    %398 = vmatprep.subr.mxu0 0.0
    %399 = vmatpush1.msra.mxu0 0.0
    %400 = vmatprep.subr.mxu0 0.0
    %401 = vmatpush1.msra.mxu0 0.0
    %402 = vmatprep.subr.mxu0 0.0
    %403 = vmatpush1.msra.mxu0 0.0
    %404 = vmatprep.subr.mxu0 0.0
    %405 = vmatpush1.msra.mxu0 0.0
    %406 = vmatprep.subr.mxu0 0.0
    %407 = vmatpush1.msra.mxu0 0.0
    %408 = vmatprep.subr.mxu0 0.0
    %409 = vmatpush1.msra.mxu0 0.0
    %410 = vmatprep.subr.mxu0 0.0
    %411 = vmatpush1.msra.mxu0 0.0
    %412 = vmatprep.subr.mxu0 0.0
    %413 = vmatpush1.msra.mxu0 0.0
    %414 = vmatprep.subr.mxu0 0.0
    %415 = vmatpush1.msra.mxu0 0.0
    %416 = vmatprep.subr.mxu0 0.0
    %417 = vmatpush1.msra.mxu0 0.0
    %418 = vmatprep.subr.mxu0 0.0
    %419 = vmatpush1.msra.mxu0 0.0
    %420 = vmatprep.subr.mxu0 0.0
    %421 = vmatpush1.msra.mxu0 0.0
    %422 = vmatprep.subr.mxu0 0.0
    %423 = vmatpush1.msra.mxu0 0.0
    %424 = vmatprep.subr.mxu0 0.0
    %425 = vmatpush1.msra.mxu0 0.0
    %426 = vmatprep.subr.mxu0 0.0
    %427 = vmatpush1.msra.mxu0 0.0
    %428 = vmatprep.subr.mxu0 0.0
    %429 = vmatpush1.msra.mxu0 0.0
    %430 = vmatprep.subr.mxu0 0.0
    %431 = vmatpush1.msra.mxu0 0.0
    %432 = vmatprep.subr.mxu0 0.0
    %433 = vmatpush1.msra.mxu0 0.0
    %434 = vmatprep.subr.mxu0 0.0
    %435 = vmatpush1.msra.mxu0 0.0
    %436 = vmatprep.subr.mxu0 0.0
    %437 = vmatpush1.msra.mxu0 0.0
    %438 = vmatprep.subr.mxu0 0.0
    %439 = vmatpush1.msra.mxu0 0.0
    %440 = vmatprep.subr.mxu0 0.0
    %441 = vmatpush1.msra.mxu0 0.0
    %442 = vmatprep.subr.mxu0 0.0
    %443 = vmatpush1.msra.mxu0 0.0
    %444 = vmatprep.mubr.f32.mxu0 0.0
    %445 = vmatmul.mubr.f32.gmra.mrb[0].mxu0 %v357
    %v446 = vpop.f32.mrb[0].mxu0
    %v447 = vadd.f32 %v318, %v446
    %v448 = vpop.f32.mrb[0].mxu0
    %449 = vmatprep.mubr.f32.mxu0 0.0
    %450 = vmatmul.mubr.f32.gmra.mrb[0].mxu0 %v360
    %v451 = vpop.f32.mrb[0].mxu0
    %v452 = vadd.f32 %v323, %v451
    %v453 = vpop.f32.mrb[0].mxu0
    %454 = vmatprep.mubr.f32.mxu0 0.0
    %455 = vmatmul.mubr.f32.gmra.mrb[0].mxu0 %v363
    %v456 = vpop.f32.mrb[0].mxu0
    %v457 = vadd.f32 %v328, %v456
    %v458 = vpop.f32.mrb[0].mxu0
    %459 = vmatprep.mubr.f32.mxu0 0.0
    %460 = vmatmul.mubr.f32.gmra.mrb[0].mxu0 %v366
    %v461 = vpop.f32.mrb[0].mxu0
    %v462 = vadd.f32 %v333, %v461
    %v463 = vpop.f32.mrb[0].mxu0
    %464 = vmatprep.mubr.f32.mxu0 0.0
    %465 = vmatmul.mubr.f32.gmra.mrb[0].mxu0 %v369
    %v466 = vpop.f32.mrb[0].mxu0
    %v467 = vadd.f32 %v338, %v466
    %v468 = vpop.f32.mrb[0].mxu0
    %469 = vmatprep.mubr.f32.mxu0 0.0
    %470 = vmatmul.mubr.f32.gmra.mrb[0].mxu0 %v372
    %v471 = vpop.f32.mrb[0].mxu0
    %v472 = vadd.f32 %v343, %v471
    %v473 = vpop.f32.mrb[0].mxu0
    %474 = vmatprep.mubr.f32.mxu0 0.0
    %475 = vmatmul.mubr.f32.gmra.mrb[0].mxu0 %v375
    %v476 = vpop.f32.mrb[0].mxu0
    %v477 = vadd.f32 %v348, %v476
    %v478 = vpop.f32.mrb[0].mxu0
    %479 = vmatprep.mubr.f32.mxu0 0.0
    %480 = vmatmul.mubr.f32.gmra.mrb[0].mxu0 %v378
    %v481 = vpop.f32.mrb[0].mxu0
    %v482 = vadd.f32 %v353, %v481
    %v483 = vpop.f32.mrb[0].mxu0
    %484 = vdwg.mxu0
    %v485 = vsel %vm233, %v447, 0.0
    %v486 = vsel %vm233, %v452, 0.0
    %v487 = vadd.f32 %v485, %v486
    %v488 = vsel %vm233, %v457, 0.0
    %v489 = vadd.f32 %v487, %v488
    %v490 = vsel %vm233, %v462, 0.0
    %v491 = vadd.f32 %v489, %v490
    %v492 = vsel %vm233, %v467, 0.0
    %v493 = vadd.f32 %v491, %v492
    %v494 = vsel %vm233, %v472, 0.0
    %v495 = vadd.f32 %v493, %v494
    %v496 = vsel %vm233, %v477, 0.0
    %v497 = vadd.f32 %v495, %v496
    %v498 = vsel %vm233, %v482, 0.0
    %v499 = vadd.f32 %v497, %v498
    %v500 = vrot.slane %v499, 4
    %v501 = vadd.f32 %v499, %v500
    %v502 = vrot.slane %v501, 2
    %v503 = vadd.f32 %v501, %v502
    %v504 = vrot.slane %v503, 1
    %v505 = vadd.f32 %v503, %v504
    %v506 = vmul.f32 %v505, 0.015625
    %v507 = vmul.f32 %v447, %v447
    %v508 = vmul.f32 %v452, %v452
    %v509 = vmul.f32 %v457, %v457
    %v510 = vmul.f32 %v462, %v462
    %v511 = vmul.f32 %v467, %v467
    %v512 = vmul.f32 %v472, %v472
    %v513 = vmul.f32 %v477, %v477
    %v514 = vmul.f32 %v482, %v482
    %v515 = vsel %vm233, %v507, 0.0
    %v516 = vsel %vm233, %v508, 0.0
    %v517 = vadd.f32 %v515, %v516
    %v518 = vsel %vm233, %v509, 0.0
    %v519 = vadd.f32 %v517, %v518
    %v520 = vsel %vm233, %v510, 0.0
    %v521 = vadd.f32 %v519, %v520
    %v522 = vsel %vm233, %v511, 0.0
    %v523 = vadd.f32 %v521, %v522
    %v524 = vsel %vm233, %v512, 0.0
    %v525 = vadd.f32 %v523, %v524
    %v526 = vsel %vm233, %v513, 0.0
    %v527 = vadd.f32 %v525, %v526
    %v528 = vsel %vm233, %v514, 0.0
    %v529 = vadd.f32 %v527, %v528
    %v530 = vrot.slane %v529, 4
    %v531 = vadd.f32 %v529, %v530
    %v532 = vrot.slane %v531, 2
    %v533 = vadd.f32 %v531, %v532
    %v534 = vrot.slane %v533, 1
    %v535 = vadd.f32 %v533, %v534
    %v536 = vmul.f32 %v535, 0.015625
    %v537 = vmul.f32 %v506, %v506
    %v538 = vsub.f32 %v536, %v537
    %v539 = vmax.f32 %v538, 0.0
    %v540 = vsub.f32 %v447, %v506
    %v541 = vsub.f32 %v452, %v506
    %v542 = vsub.f32 %v457, %v506
    %v543 = vsub.f32 %v462, %v506
    %v544 = vsub.f32 %v467, %v506
    %v545 = vsub.f32 %v472, %v506
    %v546 = vsub.f32 %v477, %v506
    %v547 = vsub.f32 %v482, %v506
    %v548 = vadd.f32 %v539, 1e-05
    %v549 = vrsqrt.pop %v548
    %v550 = vmul.f32 %v540, %v549
    %v551 = vmul.f32 %v541, %v549
    %v552 = vmul.f32 %v542, %v549
    %v553 = vmul.f32 %v543, %v549
    %v554 = vmul.f32 %v544, %v549
    %v555 = vmul.f32 %v545, %v549
    %v556 = vmul.f32 %v546, %v549
    %v557 = vmul.f32 %v547, %v549
    %v558 = vtanh.pop %v550
    %v559 = vtanh.pop %v551
    %v560 = vtanh.pop %v552
    %v561 = vtanh.pop %v553
    %v562 = vtanh.pop %v554
    %v563 = vtanh.pop %v555
    %v564 = vtanh.pop %v556
    %v565 = vtanh.pop %v557
    %567 = vset.pattern.permute.xlu0 0
    %568 = vperm.xlu0 %567, %v60
    %v569 = vpop.permute.xlu0 %568
    %v572 = vsel %vm355, %v43, 0
    %574 = vmatprep.subr.mxu0 0.0
    %575 = vmatpush1.msra.mxu0 %v558
    %576 = vmatprep.subr.mxu0 0.0
    %577 = vmatpush1.msra.mxu0 %v559
    %578 = vmatprep.subr.mxu0 0.0
    %579 = vmatpush1.msra.mxu0 %v560
    %580 = vmatprep.subr.mxu0 0.0
    %581 = vmatpush1.msra.mxu0 %v561
    %582 = vmatprep.subr.mxu0 0.0
    %583 = vmatpush1.msra.mxu0 %v562
    %584 = vmatprep.subr.mxu0 0.0
    %585 = vmatpush1.msra.mxu0 %v563
    %586 = vmatprep.subr.mxu0 0.0
    %587 = vmatpush1.msra.mxu0 %v564
    %588 = vmatprep.subr.mxu0 0.0
    %589 = vmatpush1.msra.mxu0 %v565
    %590 = vmatprep.subr.mxu0 0.0
    %591 = vmatpush1.msra.mxu0 0.0
    %592 = vmatprep.subr.mxu0 0.0
    %593 = vmatpush1.msra.mxu0 0.0
    %594 = vmatprep.subr.mxu0 0.0
    %595 = vmatpush1.msra.mxu0 0.0
    %596 = vmatprep.subr.mxu0 0.0
    %597 = vmatpush1.msra.mxu0 0.0
    %598 = vmatprep.subr.mxu0 0.0
    %599 = vmatpush1.msra.mxu0 0.0
    %600 = vmatprep.subr.mxu0 0.0
    %601 = vmatpush1.msra.mxu0 0.0
    %602 = vmatprep.subr.mxu0 0.0
    %603 = vmatpush1.msra.mxu0 0.0
    %604 = vmatprep.subr.mxu0 0.0
    %605 = vmatpush1.msra.mxu0 0.0
    %606 = vmatprep.subr.mxu0 0.0
    %607 = vmatpush1.msra.mxu0 0.0
    %608 = vmatprep.subr.mxu0 0.0
    %609 = vmatpush1.msra.mxu0 0.0
    %610 = vmatprep.subr.mxu0 0.0
    %611 = vmatpush1.msra.mxu0 0.0
    %612 = vmatprep.subr.mxu0 0.0
    %613 = vmatpush1.msra.mxu0 0.0
    %614 = vmatprep.subr.mxu0 0.0
    %615 = vmatpush1.msra.mxu0 0.0
    %616 = vmatprep.subr.mxu0 0.0
    %617 = vmatpush1.msra.mxu0 0.0
    %618 = vmatprep.subr.mxu0 0.0
    %619 = vmatpush1.msra.mxu0 0.0
    %620 = vmatprep.subr.mxu0 0.0
    %621 = vmatpush1.msra.mxu0 0.0
    %622 = vmatprep.subr.mxu0 0.0
    %623 = vmatpush1.msra.mxu0 0.0
    %624 = vmatprep.subr.mxu0 0.0
    %625 = vmatpush1.msra.mxu0 0.0
    %626 = vmatprep.subr.mxu0 0.0
    %627 = vmatpush1.msra.mxu0 0.0
    %628 = vmatprep.subr.mxu0 0.0
    %629 = vmatpush1.msra.mxu0 0.0
    %630 = vmatprep.subr.mxu0 0.0
    %631 = vmatpush1.msra.mxu0 0.0
    %632 = vmatprep.subr.mxu0 0.0
    %633 = vmatpush1.msra.mxu0 0.0
    %634 = vmatprep.subr.mxu0 0.0
    %635 = vmatpush1.msra.mxu0 0.0
    %636 = vmatprep.subr.mxu0 0.0
    %637 = vmatpush1.msra.mxu0 0.0
    %638 = vmatprep.mubr.f32.mxu0 0.0
    %639 = vmatmul.mubr.f32.gmra.mrb[0].mxu0 %v572
    %v640 = vpop.f32.mrb[0].mxu0
    %v641 = vadd.f32 %v569, %v640
    %v642 = vpop.f32.mrb[0].mxu0
    %643 = vdwg.mxu0
    %v644 = vtanh.pop %v641
    %vm645 = vcmask 60416
    %646 = vst.msk [vmem:[#allocation2] sm:$0xf] %vm645, %v644
    // Predicated region
    $region30: #{tpu_custom_call.1} parent=1 // pred_check
      _
    $region31: #{tpu_custom_call.1} parent=1 // pred_check_branch
      %648 = sbr.rel (0) target = $region33
    $region32: #{tpu_custom_call.1} parent=1 // pred_region
      %s650 = ssub.s32 64, 64
      %651 = vsyncadd [#allocation3], %s650
      %s653 = sshll.u32 [#allocation2], 4
      %s654 = int_to_ptr.vmem [resolvable:$true] %s653
      %656 = dma.vmem_to_hbm [thread:$0]  %s654, 64, %s7, [#allocation3]
    $region33: #{tpu_custom_call.1} parent=1 // pred_fallthru
      _
    // Predicated region
    $region34: #{tpu_custom_call.1} parent=1 // pred_check
      _
    $region35: #{tpu_custom_call.1} parent=1 // pred_check_branch
      %658 = sbr.rel (0) target = $region37
    $region36: #{tpu_custom_call.1} parent=1 // pred_region
      %659 = dma.done [#allocation3], 64
    $region37: #{tpu_custom_call.1} parent=1 // pred_fallthru
      _
    %660 = vsyncpa [#allocation3], 1

</llo_original>
